<compile_context>
chip_gen: v7x
topology: tpu7x:2x2x1
jax: 0.10.0
libtpu: 0.0.40
codegen_flags: <defaults>
</compile_context>

<pallas_src>
import functools

import jax
import jax.numpy as jnp
from jax.experimental import pallas as pl
from jax.experimental.pallas import tpu as pltpu

_INV_SQRT2 = 0.7071067811865476


def _round_up(x, m):
    return (x + m - 1) // m * m


def _gelu(h, approximate):
    if approximate:
        # tanh-approximate GELU: tanh goes to the EUP (its own VLIW slot) on
        # v6e/v7x, taking the activation off the VALU critical path.
        return jax.nn.gelu(h, approximate=True)
    # Exact GELU (PyTorch nn.GELU default): 0.5*x*(1+erf(x/sqrt(2))), in f32.
    return 0.5 * h * (1.0 + jax.lax.erf(h * jnp.float32(_INV_SQRT2)))


# ----------------------------------------------------------------------------
# Variant A: weights fully VMEM-resident, H-chunked body for MXU/VPU overlap.
# ----------------------------------------------------------------------------
def _mlp_kernel_resident(x_ref, w1_ref, b1_ref, w2_ref, b2_ref, o_ref,
                         *, h_chunk, approx_gelu):
    x = x_ref[...]                                 # (bm, D_in)  native dtype
    bm = x.shape[0]
    H = w1_ref.shape[1]
    D_out = w2_ref.shape[1]
    n_chunks = H // h_chunk

    acc = jnp.zeros((bm, D_out), jnp.float32)
    # Static (unrolled) chunk loop: chunk j+1's fc1 vmatmul is independent of
    # chunk j's GELU, so the scheduler can overlap MXU and VPU work.
    for j in range(n_chunks):
        lo, hi = j * h_chunk, (j + 1) * h_chunk
        h = jnp.dot(x, w1_ref[:, lo:hi], preferred_element_type=jnp.float32)
        h = h + b1_ref[:, lo:hi].astype(jnp.float32)
        h = _gelu(h, approx_gelu)
        acc = acc + jnp.dot(h.astype(w2_ref.dtype), w2_ref[lo:hi, :],
                            preferred_element_type=jnp.float32)
    o_ref[...] = (acc + b2_ref[...].astype(jnp.float32)).astype(o_ref.dtype)


# ----------------------------------------------------------------------------
# Variant B: H-tiled reduction grid axis, weights streamed from HBM.
# ----------------------------------------------------------------------------
def _mlp_kernel_htiled(x_ref, w1_ref, b1_ref, w2_ref, b2_ref, o_ref, acc_ref,
                       *, approx_gelu):
    k = pl.program_id(1)

    @pl.when(k == 0)
    def _():
        acc_ref[...] = jnp.zeros_like(acc_ref)

    h = jnp.dot(x_ref[...], w1_ref[...], preferred_element_type=jnp.float32)
    h = h + b1_ref[...].astype(jnp.float32)
    h = _gelu(h, approx_gelu)
    acc_ref[...] += jnp.dot(h.astype(w2_ref.dtype), w2_ref[...],
                            preferred_element_type=jnp.float32)

    @pl.when(k == pl.num_programs(1) - 1)
    def _():
        o_ref[...] = (acc_ref[...] + b2_ref[...].astype(jnp.float32)
                      ).astype(o_ref.dtype)


# ----------------------------------------------------------------------------
# Helpers
# ----------------------------------------------------------------------------
def _tpu_vmem_capacity_bytes():
    try:
        info = pltpu.get_tpu_info()
        for name in ("vmem_capacity_bytes", "vmem_size_bytes", "vmem_bytes"):
            cap = getattr(info, name, None)
            if cap:
                return int(cap)
    except Exception:
        pass
    return None


def _resident_spec(shape, index_map):
    # Grid-invariant block: fetch once, keep a single VMEM copy (halves the
    # footprint vs. default double-buffering).
    try:
        return pl.BlockSpec(shape, index_map, pipeline_mode=pl.Buffered(1))
    except TypeError:  # pipeline_mode unavailable in this JAX version
        return pl.BlockSpec(shape, index_map)


def _pick_chunk(h_padded, want=512):
    for c in (want, 256, 128):
        if h_padded % c == 0:
            return min(c, h_padded)
    return h_padded  # h_padded is a multiple of 128, never reached


def _select_bm(M, block_m, sub):
    """Pick a row tile. Prefer a tile that divides the sublane-rounded row
    count so we avoid a full-tensor pad/slice HBM pass for the row axis."""
    block_m = max(sub, _round_up(block_m, sub))
    m8 = _round_up(M, sub)
    bm = min(block_m, m8)
    if m8 % bm == 0:
        return bm, m8
    cand = bm
    while cand > 64:
        cand = _round_up(cand // 2, sub)
        if m8 % cand == 0:
            return cand, m8
    return bm, _round_up(M, bm)  # fallback: pad rows up to a tile multiple


# ----------------------------------------------------------------------------
# Public wrapper
# ----------------------------------------------------------------------------
@functools.partial(
    jax.jit,
    static_argnames=("block_m", "approx_gelu", "use_h_tiling", "params_dtype"))
def mlp_forward(x, w1, b1, w2, b2, *, block_m=None, approx_gelu=False,
                use_h_tiling=None, params_dtype=None):
    """ViT MLP forward: fc2(GELU(fc1(x))). Dropout with drop=0.0 is identity.

    x:  [B, N, D_in]
    w1: [D_in, H]    b1: [H]      (fc1, weight already transposed)
    w2: [H, D_out]   b2: [D_out]  (fc2, weight already transposed)
    """
    B, N, D_in = x.shape
    H = w1.shape[1]
    D_out = w2.shape[1]
    M = B * N

    if params_dtype is not None:
        # e.g. jnp.bfloat16: halves weight VMEM residency, full-rate MXU;
        # accumulation stays f32 via preferred_element_type.
        w1 = w1.astype(params_dtype)
        w2 = w2.astype(params_dtype)

    # --- generation-aware budgets -------------------------------------------
    vmem_cap = _tpu_vmem_capacity_bytes()
    if vmem_cap is not None:
        # ~100 MiB on 128-MiB parts (v5e/v6e), ~52 MiB on 64-MiB parts (v7x).
        vmem_limit = min(100 << 20, int(vmem_cap * 0.82))
    else:
        vmem_limit = 48 << 20  # conservative: safe on every generation
    if block_m is None:
        block_m = 512 if (vmem_cap is not None and vmem_cap >= (96 << 20)) else 256

    # --- row tiling -----------------------------------------------------------
    # Minimum sublane tile depends on dtype packing: 8 f32 / 16 bf16 / 32 int8.
    sub = max(8, 32 // jnp.dtype(x.dtype).itemsize)
    bm, M_p = _select_bm(M, block_m, sub)
    n_row_tiles = M_p // bm

    # Lane-width (128) padding of feature dims -> unmasked lane-dense stores and
    # dense MXU columns. Zero padding is exact for this MLP (GELU(0)=0).
    D_in_p, H_p, D_out_p = (_round_up(d, 128) for d in (D_in, H, D_out))

    x2d = x.reshape(M, D_in)
    if (M_p, D_in_p) != (M, D_in):
        x2d = jnp.pad(x2d, ((0, M_p - M), (0, D_in_p - D_in)))
    w1_p = jnp.pad(w1, ((0, D_in_p - D_in), (0, H_p - H))) \
        if (D_in_p, H_p) != (D_in, H) else w1
    w2_p = jnp.pad(w2, ((0, H_p - H), (0, D_out_p - D_out))) \
        if (H_p, D_out_p) != (H, D_out) else w2
    b1_p = jnp.pad(b1, (0, H_p - H)).reshape(1, H_p)
    b2_p = jnp.pad(b2, (0, D_out_p - D_out)).reshape(1, D_out_p)

    wt_itemsize = jnp.dtype(w1_p.dtype).itemsize
    weight_bytes = (D_in_p * H_p + H_p * D_out_p) * wt_itemsize

    if use_h_tiling is None:
        # Stream weights when they would not comfortably fit VMEM-resident, or
        # when so few row tiles exist that the one-shot weight DMA is exposed.
        use_h_tiling = (weight_bytes > int(0.6 * vmem_limit)
                        or (n_row_tiles <= 2 and weight_bytes > (8 << 20)))

    out_shape = jax.ShapeDtypeStruct((M_p, D_out_p), x.dtype)

    if not use_h_tiling:
        # ----- Variant A: resident weights, H-chunked body ---------------------
        h_chunk = _pick_chunk(H_p, want=512)
        kernel = functools.partial(_mlp_kernel_resident, h_chunk=h_chunk,
                                   approx_gelu=approx_gelu)
        out2d = pl.pallas_call(
            kernel,
            out_shape=out_shape,
            grid_spec=pltpu.PrefetchScalarGridSpec(
                num_scalar_prefetch=0,
                grid=(n_row_tiles,),
                in_specs=[
                    pl.BlockSpec((bm, D_in_p), lambda i: (i, 0)),
                    _resident_spec((D_in_p, H_p), lambda i: (0, 0)),
                    _resident_spec((1, H_p), lambda i: (0, 0)),
                    _resident_spec((H_p, D_out_p), lambda i: (0, 0)),
                    _resident_spec((1, D_out_p), lambda i: (0, 0)),
                ],
                out_specs=pl.BlockSpec((bm, D_out_p), lambda i: (i, 0)),
            ),
            compiler_params=pltpu.CompilerParams(
                dimension_semantics=("parallel",),
                vmem_limit_bytes=vmem_limit,
            ),
        )(x2d, w1_p, b1_p, w2_p, b2_p)
    else:
        # ----- Variant B: H-tiled reduction grid, streamed weights -------------
        th = _pick_chunk(H_p, want=512)
        n_h_tiles = H_p // th
        kernel = functools.partial(_mlp_kernel_htiled, approx_gelu=approx_gelu)
        out2d = pl.pallas_call(
            kernel,
            out_shape=out_shape,
            grid_spec=pltpu.PrefetchScalarGridSpec(
                num_scalar_prefetch=0,
                grid=(n_row_tiles, n_h_tiles),
                in_specs=[
                    pl.BlockSpec((bm, D_in_p), lambda i, k: (i, 0)),
                    pl.BlockSpec((D_in_p, th), lambda i, k: (0, k)),
                    pl.BlockSpec((1, th), lambda i, k: (0, k)),
                    pl.BlockSpec((th, D_out_p), lambda i, k: (k, 0)),
                    _resident_spec((1, D_out_p), lambda i, k: (0, 0)),
                ],
                out_specs=pl.BlockSpec((bm, D_out_p), lambda i, k: (i, 0)),
                scratch_shapes=[pltpu.VMEM((bm, D_out_p), jnp.float32)],
            ),
            compiler_params=pltpu.CompilerParams(
                dimension_semantics=("parallel", "arbitrary"),
                vmem_limit_bytes=vmem_limit,
            ),
        )(x2d, w1_p, b1_p, w2_p, b2_p)

    if (M_p, D_out_p) != (M, D_out):
        out2d = out2d[:M, :D_out]
    return out2d.reshape(B, N, D_out)


def _reference(x, w1, b1, w2, b2):
    h = jnp.einsum("bnd,dh->bnh", x, w1) + b1
    h = 0.5 * h * (1.0 + jax.lax.erf(h / jnp.sqrt(2.0)))
    return jnp.einsum("bnh,ho->bno", h, w2) + b2


if __name__ == "__main__":
    # Small, module-consistent shapes: batch=2, seq=8, in=32, hidden=64, out=32
    B, N, D_in, H, D_out = 2, 8, 32, 64, 32

    key = jax.random.PRNGKey(0)
    kx, k1, k2, k3, k4 = jax.random.split(key, 5)

    x = jax.random.normal(kx, (B, N, D_in), dtype=jnp.float32)
    lim1 = 1.0 / jnp.sqrt(D_in)
    lim2 = 1.0 / jnp.sqrt(H)
    # Deterministic nn.Linear-like init (uniform in +/- 1/sqrt(fan_in)).
    w1 = jax.random.uniform(k1, (D_in, H), jnp.float32, -lim1, lim1)
    b1 = jax.random.uniform(k2, (H,), jnp.float32, -lim1, lim1)
    w2 = jax.random.uniform(k3, (H, D_out), jnp.float32, -lim2, lim2)
    b2 = jax.random.uniform(k4, (D_out,), jnp.float32, -lim2, lim2)

    ref = _reference(x, w1, b1, w2, b2)

    # Resident-weight (H-chunked body) path: auto-selected at these sizes.
    out_a = jax.block_until_ready(mlp_forward(x, w1, b1, w2, b2))
    assert out_a.shape == (B, N, D_out)
    assert jnp.allclose(out_a, ref, atol=2e-4, rtol=2e-4), "resident-path mismatch"

    # Streamed / H-tiled reduction path (used on v7x for big weights & small M).
    out_b = jax.block_until_ready(
        mlp_forward(x, w1, b1, w2, b2, use_h_tiling=True))
    assert out_b.shape == (B, N, D_out)
    assert jnp.allclose(out_b, ref, atol=2e-4, rtol=2e-4), "h-tiled-path mismatch"

    print("KERNEL_OK")
</pallas_src>

<mosaic_0001>
module attributes {stable_mosaic.version = 11 : i64} {
  func.func @_mlp_kernel_resident(%arg0: i32, %arg1: memref<16x128xf32, #tpu.memory_space<vmem>>, %arg2: memref<128x128xf32, #tpu.memory_space<vmem>>, %arg3: memref<1x128xf32, #tpu.memory_space<vmem>>, %arg4: memref<128x128xf32, #tpu.memory_space<vmem>>, %arg5: memref<1x128xf32, #tpu.memory_space<vmem>>, %arg6: memref<16x128xf32, #tpu.memory_space<vmem>>) attributes {dimension_semantics = [#tpu.dimension_semantics<parallel>], iteration_bounds = array<i64: 1>, scalar_prefetch = 0 : i64, scratch_operands = 0 : i64, tpu.core_type = #tpu.core_type<tc>, window_params = [{transform_indices = @transform_0, window_bounds = array<i64: 16, 128>}, {pipeline_mode = #tpu.pipeline_mode<synchronous>, transform_indices = @transform_1, window_bounds = array<i64: 128, 128>}, {pipeline_mode = #tpu.pipeline_mode<synchronous>, transform_indices = @transform_2, window_bounds = array<i64: 1, 128>}, {pipeline_mode = #tpu.pipeline_mode<synchronous>, transform_indices = @transform_3, window_bounds = array<i64: 128, 128>}, {pipeline_mode = #tpu.pipeline_mode<synchronous>, transform_indices = @transform_4, window_bounds = array<i64: 1, 128>}, {transform_indices = @transform_5, window_bounds = array<i64: 16, 128>}]} {
    %c0 = arith.constant 0 : index
    %c0_0 = arith.constant 0 : index
    %0 = vector.load %arg1[%c0, %c0_0] : memref<16x128xf32, #tpu.memory_space<vmem>>, vector<16x128xf32>
    %cst = arith.constant 0.000000e+00 : f32
    %1 = vector.broadcast %cst : f32 to vector<16x128xf32>
    %c0_1 = arith.constant 0 : index
    %c0_2 = arith.constant 0 : index
    %2 = vector.load %arg2[%c0_1, %c0_2] : memref<128x128xf32, #tpu.memory_space<vmem>>, vector<128x128xf32>
    %cst_3 = arith.constant dense<0.000000e+00> : vector<16x128xf32>
    %3 = tpu.matmul %0, %2, %cst_3 {dimension_numbers = #tpu.dot_dimension_numbers<[1], [0], [0], [1], [0, 0, 1, 1], [], []>} : vector<16x128xf32>, vector<128x128xf32>, vector<16x128xf32> -> vector<16x128xf32>
    %c0_4 = arith.constant 0 : index
    %c0_5 = arith.constant 0 : index
    %4 = vector.load %arg3[%c0_4, %c0_5] : memref<1x128xf32, #tpu.memory_space<vmem>>, vector<1x128xf32>
    %5 = vector.broadcast %4 : vector<1x128xf32> to vector<16x128xf32>
    %6 = arith.addf %3, %5 : vector<16x128xf32>
    %cst_6 = arith.constant 5.000000e-01 : f32
    %7 = vector.broadcast %cst_6 : f32 to vector<16x128xf32>
    %8 = arith.mulf %7, %6 : vector<16x128xf32>
    %cst_7 = arith.constant 0.707106769 : f32
    %9 = vector.broadcast %cst_7 : f32 to vector<16x128xf32>
    %10 = arith.mulf %6, %9 : vector<16x128xf32>
    %11 = math.erf %10 : vector<16x128xf32>
    %cst_8 = arith.constant 1.000000e+00 : f32
    %12 = vector.broadcast %cst_8 : f32 to vector<16x128xf32>
    %13 = arith.addf %12, %11 : vector<16x128xf32>
    %14 = arith.mulf %8, %13 : vector<16x128xf32>
    %c0_9 = arith.constant 0 : index
    %c0_10 = arith.constant 0 : index
    %15 = vector.load %arg4[%c0_9, %c0_10] : memref<128x128xf32, #tpu.memory_space<vmem>>, vector<128x128xf32>
    %cst_11 = arith.constant dense<0.000000e+00> : vector<16x128xf32>
    %16 = tpu.matmul %14, %15, %cst_11 {dimension_numbers = #tpu.dot_dimension_numbers<[1], [0], [0], [1], [0, 0, 1, 1], [], []>} : vector<16x128xf32>, vector<128x128xf32>, vector<16x128xf32> -> vector<16x128xf32>
    %17 = arith.addf %1, %16 : vector<16x128xf32>
    %c0_12 = arith.constant 0 : index
    %c0_13 = arith.constant 0 : index
    %18 = vector.load %arg5[%c0_12, %c0_13] : memref<1x128xf32, #tpu.memory_space<vmem>>, vector<1x128xf32>
    %19 = vector.broadcast %18 : vector<1x128xf32> to vector<16x128xf32>
    %20 = arith.addf %17, %19 : vector<16x128xf32>
    %c0_14 = arith.constant 0 : index
    %c0_15 = arith.constant 0 : index
    %21 = vector.load %arg6[%c0_14, %c0_15] : memref<16x128xf32, #tpu.memory_space<vmem>>, vector<16x128xf32>
    tpu.vector_store %arg6[%c0_14, %c0_15], %20 {strides = array<i32>} : memref<16x128xf32, #tpu.memory_space<vmem>>, vector<16x128xf32>,
    return
  }
  func.func @transform_0(%arg0: i32) -> (i32, i32) {
    %c0_i32 = arith.constant 0 : i32
    %c0_i32_0 = arith.constant 0 : i32
    return %arg0, %c0_i32 : i32, i32
  }
  func.func @transform_1(%arg0: i32) -> (i32, i32) {
    %c0_i32 = arith.constant 0 : i32
    %c0_i32_0 = arith.constant 0 : i32
    %c0_i32_1 = arith.constant 0 : i32
    return %c0_i32, %c0_i32_0 : i32, i32
  }
  func.func @transform_2(%arg0: i32) -> (i32, i32) {
    %c0_i32 = arith.constant 0 : i32
    %c0_i32_0 = arith.constant 0 : i32
    %c0_i32_1 = arith.constant 0 : i32
    return %c0_i32, %c0_i32_0 : i32, i32
  }
  func.func @transform_3(%arg0: i32) -> (i32, i32) {
    %c0_i32 = arith.constant 0 : i32
    %c0_i32_0 = arith.constant 0 : i32
    %c0_i32_1 = arith.constant 0 : i32
    return %c0_i32, %c0_i32_0 : i32, i32
  }
  func.func @transform_4(%arg0: i32) -> (i32, i32) {
    %c0_i32 = arith.constant 0 : i32
    %c0_i32_0 = arith.constant 0 : i32
    %c0_i32_1 = arith.constant 0 : i32
    return %c0_i32, %c0_i32_0 : i32, i32
  }
  func.func @transform_5(%arg0: i32) -> (i32, i32) {
    %c0_i32 = arith.constant 0 : i32
    %c0_i32_0 = arith.constant 0 : i32
    return %arg0, %c0_i32 : i32, i32
  }
}

</mosaic_0001>

<llo_original>
// kernel: mlp_forward.1
$region0: #{mlp_forward.1}
  #allocation0 [shape = 'u32[]', space=smem, size = 0x4, offset = 0x4, fixed_abs, tag = 'smem constant byte address 0x4 - core index']
  #allocation1 [shape = 'u32[144,128]{1,0:T(1,128)}', space=vmem, size = 0x12000, scoped, tag = 'internal scratch']
  %s0 = inlined_call_operand.vmem [shape: f32[16,128], index: 0, kind: input, shape index: {}]
  %s1 = inlined_call_operand.vmem [shape: f32[128,128], index: 1, kind: input, shape index: {}]
  %s2 = inlined_call_operand.vmem [shape: f32[1,128], index: 2, kind: input, shape index: {}]
  %s3 = inlined_call_operand.vmem [shape: f32[128,128], index: 3, kind: input, shape index: {}]
  %s4 = inlined_call_operand.vmem [shape: f32[1,128], index: 4, kind: input, shape index: {}]
  %s5 = inlined_call_operand.vmem [shape: f32[16,128], index: 5, kind: output, shape index: {}]
  %s6 = sld [smem:[#allocation0]]
  $region30: #{mlp_forward.1} parent=0
    _
  %s8 = ssub.s32 1, %s6
  %s9 = scalar_select 0, %s8, %s6
  // Predicated region
  $region2: #{mlp_forward.1} parent=0 // pred_check
    _
  $region3: #{mlp_forward.1} parent=0 // pred_check_branch
    %11 = sbr.rel (0) target = $region5
  $region4: #{mlp_forward.1} parent=0 // pred_region
    _
  $region5: #{mlp_forward.1} parent=0 // pred_fallthru
    _
  // Predicated region
  $region6: #{mlp_forward.1} parent=0 // pred_check
    _
  $region7: #{mlp_forward.1} parent=0 // pred_check_branch
    %13 = sbr.rel (0) target = $region9
  $region8: #{mlp_forward.1} parent=0 // pred_region
    _
  $region9: #{mlp_forward.1} parent=0 // pred_fallthru
    _
  // Predicated region
  $region10: #{mlp_forward.1} parent=0 // pred_check
    _
  $region11: #{mlp_forward.1} parent=0 // pred_check_branch
    %15 = sbr.rel (0) target = $region13
  $region12: #{mlp_forward.1} parent=0 // pred_region
    _
  $region13: #{mlp_forward.1} parent=0 // pred_fallthru
    _
  // Predicated region
  $region14: #{mlp_forward.1} parent=0 // pred_check
    _
  $region15: #{mlp_forward.1} parent=0 // pred_check_branch
    %17 = sbr.rel (0) target = $region17
  $region16: #{mlp_forward.1} parent=0 // pred_region
    _
  $region17: #{mlp_forward.1} parent=0 // pred_fallthru
    _
  // Predicated region
  $region18: #{mlp_forward.1} parent=0 // pred_check
    _
  $region19: #{mlp_forward.1} parent=0 // pred_check_branch
    %19 = sbr.rel (0) target = $region21
  $region20: #{mlp_forward.1} parent=0 // pred_region
    _
  $region21: #{mlp_forward.1} parent=0 // pred_fallthru
    _
  %v20 = vld [vmem:[%s0] sm:$0xff]
  %v21 = vld [vmem:[%s0 + $0x8] sm:$0xff]
  %v22 = vld [vmem:[%s1] sm:$0xff]
  %v23 = vld [vmem:[%s1 + $0x8] sm:$0xff]
  %v24 = vld [vmem:[%s1 + $0x10] sm:$0xff]
  %v25 = vld [vmem:[%s1 + $0x18] sm:$0xff]
  %v26 = vld [vmem:[%s1 + $0x20] sm:$0xff]
  %v27 = vld [vmem:[%s1 + $0x28] sm:$0xff]
  %v28 = vld [vmem:[%s1 + $0x30] sm:$0xff]
  %v29 = vld [vmem:[%s1 + $0x38] sm:$0xff]
  %v30 = vld [vmem:[%s1 + $0x40] sm:$0xff]
  %v31 = vld [vmem:[%s1 + $0x48] sm:$0xff]
  %v32 = vld [vmem:[%s1 + $0x50] sm:$0xff]
  %v33 = vld [vmem:[%s1 + $0x58] sm:$0xff]
  %v34 = vld [vmem:[%s1 + $0x60] sm:$0xff]
  %v35 = vld [vmem:[%s1 + $0x68] sm:$0xff]
  %v36 = vld [vmem:[%s1 + $0x70] sm:$0xff]
  %v37 = vld [vmem:[%s1 + $0x78] sm:$0xff]
  %v38 = vld [vmem:[%s2] sm:$0x1]
  %v40 = vlaneseq
  %v41 = vshrl.u32 %v40, 7
  %v42 = vsub.s32 0, %v41
  %v43 = vrot.slane %v38, %v42
  %45 = vmatprep.subr.mxu0 0.0
  %46 = vmatpush1.msra.mxu0 %v22
  %47 = vmatprep.subr.mxu0 0.0
  %48 = vmatpush1.msra.mxu0 %v23
  %49 = vmatprep.subr.mxu0 0.0
  %50 = vmatpush1.msra.mxu0 %v24
  %51 = vmatprep.subr.mxu0 0.0
  %52 = vmatpush1.msra.mxu0 %v25
  %53 = vmatprep.subr.mxu0 0.0
  %54 = vmatpush1.msra.mxu0 %v26
  %55 = vmatprep.subr.mxu0 0.0
  %56 = vmatpush1.msra.mxu0 %v27
  %57 = vmatprep.subr.mxu0 0.0
  %58 = vmatpush1.msra.mxu0 %v28
  %59 = vmatprep.subr.mxu0 0.0
  %60 = vmatpush1.msra.mxu0 %v29
  %61 = vmatprep.subr.mxu0 0.0
  %62 = vmatpush1.msra.mxu0 %v30
  %63 = vmatprep.subr.mxu0 0.0
  %64 = vmatpush1.msra.mxu0 %v31
  %65 = vmatprep.subr.mxu0 0.0
  %66 = vmatpush1.msra.mxu0 %v32
  %67 = vmatprep.subr.mxu0 0.0
  %68 = vmatpush1.msra.mxu0 %v33
  %69 = vmatprep.subr.mxu0 0.0
  %70 = vmatpush1.msra.mxu0 %v34
  %71 = vmatprep.subr.mxu0 0.0
  %72 = vmatpush1.msra.mxu0 %v35
  %73 = vmatprep.subr.mxu0 0.0
  %74 = vmatpush1.msra.mxu0 %v36
  %75 = vmatprep.subr.mxu0 0.0
  %76 = vmatpush1.msra.mxu0 %v37
  %77 = vmatprep.subr.mxu0 0.0
  %78 = vmatpush1.msra.mxu0 0.0
  %79 = vmatprep.subr.mxu0 0.0
  %80 = vmatpush1.msra.mxu0 0.0
  %81 = vmatprep.subr.mxu0 0.0
  %82 = vmatpush1.msra.mxu0 0.0
  %83 = vmatprep.subr.mxu0 0.0
  %84 = vmatpush1.msra.mxu0 0.0
  %85 = vmatprep.subr.mxu0 0.0
  %86 = vmatpush1.msra.mxu0 0.0
  %87 = vmatprep.subr.mxu0 0.0
  %88 = vmatpush1.msra.mxu0 0.0
  %89 = vmatprep.subr.mxu0 0.0
  %90 = vmatpush1.msra.mxu0 0.0
  %91 = vmatprep.subr.mxu0 0.0
  %92 = vmatpush1.msra.mxu0 0.0
  %93 = vmatprep.subr.mxu0 0.0
  %94 = vmatpush1.msra.mxu0 0.0
  %95 = vmatprep.subr.mxu0 0.0
  %96 = vmatpush1.msra.mxu0 0.0
  %97 = vmatprep.subr.mxu0 0.0
  %98 = vmatpush1.msra.mxu0 0.0
  %99 = vmatprep.subr.mxu0 0.0
  %100 = vmatpush1.msra.mxu0 0.0
  %101 = vmatprep.subr.mxu0 0.0
  %102 = vmatpush1.msra.mxu0 0.0
  %103 = vmatprep.subr.mxu0 0.0
  %104 = vmatpush1.msra.mxu0 0.0
  %105 = vmatprep.subr.mxu0 0.0
  %106 = vmatpush1.msra.mxu0 0.0
  %107 = vmatprep.subr.mxu0 0.0
  %108 = vmatpush1.msra.mxu0 0.0
  %109 = vmatprep.mubr.f32.mxu0 0.0
  %110 = vmatmul.mubr.f32.gmra.mrb[0].mxu0 %v20
  %v111 = vpop.f32.mrb[0].mxu0
  %v112 = vadd.f32 %v43, %v111
  %v113 = vpop.f32.mrb[0].mxu0
  %114 = vmatprep.mubr.f32.mxu0 0.0
  %115 = vmatmul.mubr.f32.gmra.mrb[0].mxu0 %v21
  %v116 = vpop.f32.mrb[0].mxu0
  %v117 = vadd.f32 %v43, %v116
  %v118 = vpop.f32.mrb[0].mxu0
  %119 = vdwg.mxu0
  %v120 = vmul.f32 %v112, 0.5
  %v121 = vmul.f32 %v117, 0.5
  %v122 = vmul.f32 %v112, 0.70710677
  %v123 = vmul.f32 %v117, 0.70710677
  %v124 = verf.f32.pop %v122
  %v125 = verf.f32.pop %v123
  %v126 = vadd.f32 %v124, 1.0
  %v127 = vadd.f32 %v125, 1.0
  %v128 = vmul.f32 %v120, %v126
  %v129 = vmul.f32 %v121, %v127
  %v130 = vld [vmem:[%s3] sm:$0xff]
  %v131 = vld [vmem:[%s3 + $0x8] sm:$0xff]
  %v132 = vld [vmem:[%s3 + $0x10] sm:$0xff]
  %v133 = vld [vmem:[%s3 + $0x18] sm:$0xff]
  %v134 = vld [vmem:[%s3 + $0x20] sm:$0xff]
  %v135 = vld [vmem:[%s3 + $0x28] sm:$0xff]
  %v136 = vld [vmem:[%s3 + $0x30] sm:$0xff]
  %v137 = vld [vmem:[%s3 + $0x38] sm:$0xff]
  %v138 = vld [vmem:[%s3 + $0x40] sm:$0xff]
  %v139 = vld [vmem:[%s3 + $0x48] sm:$0xff]
  %v140 = vld [vmem:[%s3 + $0x50] sm:$0xff]
  %v141 = vld [vmem:[%s3 + $0x58] sm:$0xff]
  %v142 = vld [vmem:[%s3 + $0x60] sm:$0xff]
  %v143 = vld [vmem:[%s3 + $0x68] sm:$0xff]
  %v144 = vld [vmem:[%s3 + $0x70] sm:$0xff]
  %v145 = vld [vmem:[%s3 + $0x78] sm:$0xff]
  %v146 = vld [vmem:[%s4] sm:$0x1]
  %v148 = vlaneseq
  %v149 = vshrl.u32 %v148, 7
  %v150 = vsub.s32 0, %v149
  %v151 = vrot.slane %v146, %v150
  %153 = vmatprep.subr.mxu0 0.0
  %154 = vmatpush1.msra.mxu0 %v130
  %155 = vmatprep.subr.mxu0 0.0
  %156 = vmatpush1.msra.mxu0 %v131
  %157 = vmatprep.subr.mxu0 0.0
  %158 = vmatpush1.msra.mxu0 %v132
  %159 = vmatprep.subr.mxu0 0.0
  %160 = vmatpush1.msra.mxu0 %v133
  %161 = vmatprep.subr.mxu0 0.0
  %162 = vmatpush1.msra.mxu0 %v134
  %163 = vmatprep.subr.mxu0 0.0
  %164 = vmatpush1.msra.mxu0 %v135
  %165 = vmatprep.subr.mxu0 0.0
  %166 = vmatpush1.msra.mxu0 %v136
  %167 = vmatprep.subr.mxu0 0.0
  %168 = vmatpush1.msra.mxu0 %v137
  %169 = vmatprep.subr.mxu0 0.0
  %170 = vmatpush1.msra.mxu0 %v138
  %171 = vmatprep.subr.mxu0 0.0
  %172 = vmatpush1.msra.mxu0 %v139
  %173 = vmatprep.subr.mxu0 0.0
  %174 = vmatpush1.msra.mxu0 %v140
  %175 = vmatprep.subr.mxu0 0.0
  %176 = vmatpush1.msra.mxu0 %v141
  %177 = vmatprep.subr.mxu0 0.0
  %178 = vmatpush1.msra.mxu0 %v142
  %179 = vmatprep.subr.mxu0 0.0
  %180 = vmatpush1.msra.mxu0 %v143
  %181 = vmatprep.subr.mxu0 0.0
  %182 = vmatpush1.msra.mxu0 %v144
  %183 = vmatprep.subr.mxu0 0.0
  %184 = vmatpush1.msra.mxu0 %v145
  %185 = vmatprep.subr.mxu0 0.0
  %186 = vmatpush1.msra.mxu0 0.0
  %187 = vmatprep.subr.mxu0 0.0
  %188 = vmatpush1.msra.mxu0 0.0
  %189 = vmatprep.subr.mxu0 0.0
  %190 = vmatpush1.msra.mxu0 0.0
  %191 = vmatprep.subr.mxu0 0.0
  %192 = vmatpush1.msra.mxu0 0.0
  %193 = vmatprep.subr.mxu0 0.0
  %194 = vmatpush1.msra.mxu0 0.0
  %195 = vmatprep.subr.mxu0 0.0
  %196 = vmatpush1.msra.mxu0 0.0
  %197 = vmatprep.subr.mxu0 0.0
  %198 = vmatpush1.msra.mxu0 0.0
  %199 = vmatprep.subr.mxu0 0.0
  %200 = vmatpush1.msra.mxu0 0.0
  %201 = vmatprep.subr.mxu0 0.0
  %202 = vmatpush1.msra.mxu0 0.0
  %203 = vmatprep.subr.mxu0 0.0
  %204 = vmatpush1.msra.mxu0 0.0
  %205 = vmatprep.subr.mxu0 0.0
  %206 = vmatpush1.msra.mxu0 0.0
  %207 = vmatprep.subr.mxu0 0.0
  %208 = vmatpush1.msra.mxu0 0.0
  %209 = vmatprep.subr.mxu0 0.0
  %210 = vmatpush1.msra.mxu0 0.0
  %211 = vmatprep.subr.mxu0 0.0
  %212 = vmatpush1.msra.mxu0 0.0
  %213 = vmatprep.subr.mxu0 0.0
  %214 = vmatpush1.msra.mxu0 0.0
  %215 = vmatprep.subr.mxu0 0.0
  %216 = vmatpush1.msra.mxu0 0.0
  %217 = vmatprep.mubr.f32.mxu0 0.0
  %218 = vmatmul.mubr.f32.gmra.mrb[0].mxu0 %v128
  %v219 = vpop.f32.mrb[0].mxu0
  %v220 = vadd.f32 %v151, %v219
  %v221 = vpop.f32.mrb[0].mxu0
  %222 = vmatprep.mubr.f32.mxu0 0.0
  %223 = vmatmul.mubr.f32.gmra.mrb[0].mxu0 %v129
  %v224 = vpop.f32.mrb[0].mxu0
  %v225 = vadd.f32 %v151, %v224
  %v226 = vpop.f32.mrb[0].mxu0
  %227 = vdwg.mxu0
  %228 = vst [vmem:[%s5] sm:$0xff] %v220
  %229 = vst [vmem:[%s5 + $0x8] sm:$0xff] %v225
  // Predicated region
  $region22: #{mlp_forward.1} parent=0 // pred_check
    _
  $region23: #{mlp_forward.1} parent=0 // pred_check_branch
    %231 = sbr.rel (0) target = $region25
  $region24: #{mlp_forward.1} parent=0 // pred_region
    _
  $region25: #{mlp_forward.1} parent=0 // pred_fallthru
    _
  // Predicated region
  $region26: #{mlp_forward.1} parent=0 // pred_check
    _
  $region27: #{mlp_forward.1} parent=0 // pred_check_branch
    %233 = sbr.rel (0) target = $region29
  $region28: #{mlp_forward.1} parent=0 // pred_region
    _
  $region29: #{mlp_forward.1} parent=0 // pred_fallthru
    _

</llo_original>
